<compile_context>
chip_gen: v7x
topology: tpu7x:2x2x1
jax: 0.10.0
libtpu: 0.0.40
codegen_flags: <defaults>
</compile_context>

<pallas_src>
import math
import jax
import jax.numpy as jnp
from jax.experimental import pallas as pl
from jax.experimental.pallas import tpu as pltpu

PAD = 0  # const.PAD
_VMEM_LIMIT = 32 * 1024 * 1024  # safe on v5e/v6e (128 MiB) and v7x (64 MiB) physical VMEM


def _round_up(x, m):
    return (x + m - 1) // m * m


# ------------------------- tiled matmul + bias kernel -------------------------
def matmul_bias_kernel(x_ref, w_ref, b_ref, o_ref, acc_ref):
    k = pl.program_id(2)

    @pl.when(k == 0)
    def _():
        acc_ref[...] = jnp.zeros_like(acc_ref)

    acc_ref[...] += jnp.dot(x_ref[...], w_ref[...], preferred_element_type=jnp.float32)

    @pl.when(k == pl.num_programs(2) - 1)
    def _():
        o_ref[...] = (acc_ref[...] + b_ref[...]).astype(o_ref.dtype)


def matmul_bias(x, w, b_row):
    """x: [M, K] f32, w: [K, N] f32, b_row: [1, N] f32 -> [M, N] f32.

    Pads M to a sublane multiple and N to a lane (128) multiple internally so
    stores are unmasked and tiles are vreg-aligned; slices the result back.
    """
    M, K = x.shape
    K2, N = w.shape
    assert K == K2

    Mp = _round_up(M, 8)
    if Mp > 256:
        tm = 256
        Mp = _round_up(M, tm)
    else:
        tm = Mp

    Np = _round_up(N, 128)
    if Np > 512:
        tn = 512
        Np = _round_up(N, tn)
    else:
        tn = Np

    Kp = _round_up(K, 8)
    if Kp > 512:
        tk = 512
        Kp = _round_up(K, tk)
    else:
        tk = Kp

    xp = jnp.pad(x, ((0, Mp - M), (0, Kp - K)))
    wp = jnp.pad(w, ((0, Kp - K), (0, Np - N)))
    bp = jnp.pad(b_row, ((0, 0), (0, Np - N)))

    out = pl.pallas_call(
        matmul_bias_kernel,
        out_shape=jax.ShapeDtypeStruct((Mp, Np), jnp.float32),
        grid_spec=pltpu.PrefetchScalarGridSpec(
            num_scalar_prefetch=0,
            grid=(Mp // tm, Np // tn, Kp // tk),
            in_specs=[
                pl.BlockSpec((tm, tk), lambda i, j, k: (i, k)),
                pl.BlockSpec((tk, tn), lambda i, j, k: (k, j)),
                pl.BlockSpec((1, tn), lambda i, j, k: (0, j)),
            ],
            out_specs=pl.BlockSpec((tm, tn), lambda i, j, k: (i, j)),
            scratch_shapes=[pltpu.VMEM((tm, tn), jnp.float32)],
        ),
        compiler_params=pltpu.CompilerParams(
            dimension_semantics=("parallel", "parallel", "arbitrary"),
            vmem_limit_bytes=_VMEM_LIMIT,
        ),
    )(xp, wp, bp)
    return out[:M, :N]


# --------------------------- LSTM recurrence kernel ---------------------------
def lstm_recurrence_kernel(xg_ref, whh_ref, len_ref, out_ref, h_sc, c_sc):
    # xg_ref:  [TC, B, 4H]  precomputed x @ W_ih^T + (b_ih + b_hh) for this time chunk
    # whh_ref: [H, 4H]      W_hh^T (resident across all grid steps)
    # len_ref: [B, 1]       int32 sequence lengths
    # out_ref: [TC, B, H]
    # h_sc/c_sc: [B, H] f32 scratch, persist across time chunks
    chunk = pl.program_id(0)
    TC = xg_ref.shape[0]
    H = h_sc.shape[-1]

    @pl.when(chunk == 0)
    def _():
        h_sc[...] = jnp.zeros_like(h_sc)
        c_sc[...] = jnp.zeros_like(c_sc)

    lengths = len_ref[...]          # [B, 1] int32
    whh = whh_ref[...]              # [H, 4H]
    t0 = chunk * TC

    def step(lt, carry):
        xg = xg_ref[lt]             # [B, 4H]
        h_prev = h_sc[...]
        c_prev = c_sc[...]

        gates = xg + jnp.dot(h_prev, whh, preferred_element_type=jnp.float32)

        i = jax.nn.sigmoid(gates[:, 0 * H:1 * H])
        f = jax.nn.sigmoid(gates[:, 1 * H:2 * H])
        g = jnp.tanh(gates[:, 2 * H:3 * H])
        o = jax.nn.sigmoid(gates[:, 3 * H:4 * H])

        c_new = f * c_prev + i * g
        h_new = o * jnp.tanh(c_new)

        m = ((t0 + lt) < lengths).astype(jnp.float32)   # [B, 1], built in-kernel
        h_sc[...] = m * h_new + (1.0 - m) * h_prev
        c_sc[...] = m * c_new + (1.0 - m) * c_prev
        out_ref[lt] = (h_new * m).astype(out_ref.dtype)  # padded steps -> 0 (like pad())
        return carry

    jax.lax.fori_loop(0, TC, step, 0, unroll=True)


def lstm_recurrence(xg, whh_t, len_col, hidden_dim, time_chunk):
    """xg: [T_pad, B_pad, 4H] (input projection + bias already applied)."""
    T_pad, B_pad, G = xg.shape
    H = hidden_dim
    assert G == 4 * H and T_pad % time_chunk == 0

    return pl.pallas_call(
        lstm_recurrence_kernel,
        out_shape=jax.ShapeDtypeStruct((T_pad, B_pad, H), jnp.float32),
        grid_spec=pltpu.PrefetchScalarGridSpec(
            num_scalar_prefetch=0,
            grid=(T_pad // time_chunk,),
            in_specs=[
                pl.BlockSpec((time_chunk, B_pad, 4 * H), lambda c: (c, 0, 0)),  # x-gates chunk
                pl.BlockSpec((H, 4 * H), lambda c: (0, 0)),                     # W_hh^T
                pl.BlockSpec((B_pad, 1), lambda c: (0, 0)),                     # lengths
            ],
            out_specs=pl.BlockSpec((time_chunk, B_pad, H), lambda c: (c, 0, 0)),
            scratch_shapes=[
                pltpu.VMEM((B_pad, H), jnp.float32),   # h
                pltpu.VMEM((B_pad, H), jnp.float32),   # c
            ],
        ),
        compiler_params=pltpu.CompilerParams(
            dimension_semantics=("arbitrary",),
            vmem_limit_bytes=_VMEM_LIMIT,
        ),
    )(xg, whh_t, len_col)


# --------------------------- Model params / forward ---------------------------
def init_params(key, voc_size, dim_word, dim_rnn, num_layers):
    n_keys = 2 + 4 * num_layers
    ks = jax.random.split(key, n_keys)
    ki = iter(ks)

    V1 = voc_size + 1
    emb = jax.random.normal(next(ki), (V1, dim_word), jnp.float32) * 0.1
    emb = emb.at[PAD].set(0.0)   # padding_idx=PAD

    lstm = []
    in_dim = dim_word
    std = 1.0 / math.sqrt(dim_rnn)
    for _ in range(num_layers):
        w_ih = jax.random.uniform(next(ki), (4 * dim_rnn, in_dim), jnp.float32, -std, std)
        w_hh = jax.random.uniform(next(ki), (4 * dim_rnn, dim_rnn), jnp.float32, -std, std)
        b_ih = jax.random.uniform(next(ki), (4 * dim_rnn,), jnp.float32, -std, std)
        b_hh = jax.random.uniform(next(ki), (4 * dim_rnn,), jnp.float32, -std, std)
        lstm.append(dict(w_ih_t=w_ih.T, w_hh_t=w_hh.T, b=(b_ih + b_hh)[None, :]))
        in_dim = dim_rnn

    k_out = jax.random.split(ks[-1], 2)
    std_o = 1.0 / math.sqrt(dim_rnn)
    w_out = jax.random.uniform(k_out[0], (V1, dim_rnn), jnp.float32, -std_o, std_o)
    b_out = jax.random.uniform(k_out[1], (V1,), jnp.float32, -std_o, std_o)

    return dict(emb=emb, lstm=lstm, w_out_t=w_out.T, b_out=b_out[None, :],
                dim_rnn=dim_rnn, num_layers=num_layers)


def language_model_forward(params, inputs, lengths):
    """inputs: int32 [T, B]; lengths: int32 [B] (descending).  Returns [T*B, voc+1]."""
    T, B = inputs.shape
    H = params["dim_rnn"]

    # Embedding lookup (XLA glue gather) + dropout (identity in eval mode).
    word_vecs = jnp.take(params["emb"], inputs, axis=0)          # [T, B, dim_word]
    D = word_vecs.shape[-1]

    # Sublane-align batch, chunk time for the in-kernel recurrence loop.
    B_pad = _round_up(max(B, 8), 8)
    TC = T if T <= 16 else 16
    T_pad = _round_up(T, TC)

    x = jnp.pad(word_vecs, ((0, T_pad - T), (0, B_pad - B), (0, 0)))
    len_col = jnp.pad(lengths.astype(jnp.int32), (0, B_pad - B))[:, None]   # [B_pad, 1]

    for layer in params["lstm"]:
        # Input projection hoisted off the sequential path: one big MXU GEMM.
        xf = x.reshape(T_pad * B_pad, x.shape[-1])
        xg = matmul_bias(xf, layer["w_ih_t"], layer["b"])        # [T_pad*B_pad, 4H]
        xg = xg.reshape(T_pad, B_pad, 4 * H)
        # Sequential recurrence: only h @ W_hh^T per step, time loop in-kernel.
        x = lstm_recurrence(xg, layer["w_hh_t"], len_col, H, TC)  # [T_pad, B_pad, H]
        # inter-layer dropout: identity (eval mode)

    rnn_output = x[:T, :B, :]                                    # [T, B, H]
    flat = rnn_output.reshape(T * B, H)
    # Output linear: tiled GEMM with vocab padded to 128 lanes internally.
    return matmul_bias(flat, params["w_out_t"], params["b_out"])  # [T*B, voc+1]
    # TODO(synk): LogSoftmax is defined on the module but not applied in forward(); omitted.


# ------------------------------ pure-JAX reference ---------------------------
def reference_forward(params, inputs, lengths):
    T, B = inputs.shape
    H = params["dim_rnn"]
    x = jnp.take(params["emb"], inputs, axis=0)
    mask_tb = (jnp.arange(T)[:, None] < lengths[None, :]).astype(jnp.float32)
    for layer in params["lstm"]:
        w_ih_t, w_hh_t, b = layer["w_ih_t"], layer["w_hh_t"], layer["b"]
        h = jnp.zeros((B, H), jnp.float32)
        c = jnp.zeros((B, H), jnp.float32)
        outs = []
        for t in range(T):
            gates = x[t] @ w_ih_t + h @ w_hh_t + b
            i = jax.nn.sigmoid(gates[:, 0 * H:1 * H])
            f = jax.nn.sigmoid(gates[:, 1 * H:2 * H])
            g = jnp.tanh(gates[:, 2 * H:3 * H])
            o = jax.nn.sigmoid(gates[:, 3 * H:4 * H])
            c_new = f * c + i * g
            h_new = o * jnp.tanh(c_new)
            m = mask_tb[t][:, None]
            h = m * h_new + (1 - m) * h
            c = m * c_new + (1 - m) * c
            outs.append(h_new * m)
        x = jnp.stack(outs, axis=0)
    flat = x.reshape(T * B, H)
    return flat @ params["w_out_t"] + params["b_out"]


# ----------------------------------- main -------------------------------------
if __name__ == "__main__":
    voc_size, dim_word, dim_rnn, num_layers = 40, 32, 32, 2
    T, B = 8, 2

    key = jax.random.PRNGKey(0)
    kp, ki = jax.random.split(key)
    params = init_params(kp, voc_size, dim_word, dim_rnn, num_layers)

    lengths = jnp.array([8, 5], dtype=jnp.int32)  # descending, as pack() requires
    inputs = jax.random.randint(ki, (T, B), 1, voc_size + 1, dtype=jnp.int32)
    # zero out positions beyond each sequence length (PAD tokens)
    valid = jnp.arange(T)[:, None] < lengths[None, :]
    inputs = jnp.where(valid, inputs, PAD)

    out = language_model_forward(params, inputs, lengths)
    out = jax.block_until_ready(out)
    assert out.shape == (T * B, voc_size + 1), out.shape

    ref = jax.block_until_ready(reference_forward(params, inputs, lengths))
    assert jnp.allclose(out, ref, rtol=1e-3, atol=1e-3), float(jnp.abs(out - ref).max())

    print("KERNEL_OK")
</pallas_src>

<mosaic_0001>
module attributes {stable_mosaic.version = 11 : i64} {
  func.func @matmul_bias_kernel(%arg0: i32, %arg1: i32, %arg2: i32, %arg3: memref<64x32xf32, #tpu.memory_space<vmem>>, %arg4: memref<32x128xf32, #tpu.memory_space<vmem>>, %arg5: memref<1x128xf32, #tpu.memory_space<vmem>>, %arg6: memref<64x128xf32, #tpu.memory_space<vmem>>, %arg7: memref<64x128xf32, #tpu.memory_space<vmem>>) attributes {dimension_semantics = [#tpu.dimension_semantics<parallel>, #tpu.dimension_semantics<parallel>, #tpu.dimension_semantics<arbitrary>], iteration_bounds = array<i64: 1, 1, 1>, scalar_prefetch = 0 : i64, scratch_operands = 1 : i64, tpu.core_type = #tpu.core_type<tc>, window_params = [{transform_indices = @transform_0, window_bounds = array<i64: 64, 32>}, {transform_indices = @transform_1, window_bounds = array<i64: 32, 128>}, {transform_indices = @transform_2, window_bounds = array<i64: 1, 128>}, {transform_indices = @transform_3, window_bounds = array<i64: 64, 128>}]} {
    %c0_i32 = arith.constant 0 : i32
    %0 = arith.cmpi eq, %arg2, %c0_i32 : i32
    %1 = arith.extui %0 : i1 to i32
    %c0_i32_0 = arith.constant 0 : i32
    %2 = arith.cmpi ne, %1, %c0_i32_0 : i32
    scf.if %2 {
      %cst_10 = arith.constant 0.000000e+00 : f32
      %12 = vector.broadcast %cst_10 : f32 to vector<64x128xf32>
      %c0_11 = arith.constant 0 : index
      %c0_12 = arith.constant 0 : index
      %13 = vector.load %arg7[%c0_11, %c0_12] : memref<64x128xf32, #tpu.memory_space<vmem>>, vector<64x128xf32>
      tpu.vector_store %arg7[%c0_11, %c0_12], %12 {strides = array<i32>} : memref<64x128xf32, #tpu.memory_space<vmem>>, vector<64x128xf32>,
    } else {
    }
    %c0 = arith.constant 0 : index
    %c0_1 = arith.constant 0 : index
    %3 = vector.load %arg7[%c0, %c0_1] : memref<64x128xf32, #tpu.memory_space<vmem>>, vector<64x128xf32>
    %c0_2 = arith.constant 0 : index
    %c0_3 = arith.constant 0 : index
    %4 = vector.load %arg3[%c0_2, %c0_3] : memref<64x32xf32, #tpu.memory_space<vmem>>, vector<64x32xf32>
    %c0_4 = arith.constant 0 : index
    %c0_5 = arith.constant 0 : index
    %5 = vector.load %arg4[%c0_4, %c0_5] : memref<32x128xf32, #tpu.memory_space<vmem>>, vector<32x128xf32>
    %cst = arith.constant dense<0.000000e+00> : vector<64x128xf32>
    %6 = tpu.matmul %4, %5, %cst {dimension_numbers = #tpu.dot_dimension_numbers<[1], [0], [0], [1], [0, 0, 1, 1], [], []>} : vector<64x32xf32>, vector<32x128xf32>, vector<64x128xf32> -> vector<64x128xf32>
    %7 = arith.addf %3, %6 : vector<64x128xf32>
    %c0_6 = arith.constant 0 : index
    %c0_7 = arith.constant 0 : index
    %8 = vector.load %arg7[%c0_6, %c0_7] : memref<64x128xf32, #tpu.memory_space<vmem>>, vector<64x128xf32>
    tpu.vector_store %arg7[%c0_6, %c0_7], %7 {strides = array<i32>} : memref<64x128xf32, #tpu.memory_space<vmem>>, vector<64x128xf32>,
    %c0_i32_8 = arith.constant 0 : i32
    %9 = arith.cmpi eq, %arg2, %c0_i32_8 : i32
    %10 = arith.extui %9 : i1 to i32
    %c0_i32_9 = arith.constant 0 : i32
    %11 = arith.cmpi ne, %10, %c0_i32_9 : i32
    scf.if %11 {
      %c0_10 = arith.constant 0 : index
      %c0_11 = arith.constant 0 : index
      %12 = vector.load %arg7[%c0_10, %c0_11] : memref<64x128xf32, #tpu.memory_space<vmem>>, vector<64x128xf32>
      %c0_12 = arith.constant 0 : index
      %c0_13 = arith.constant 0 : index
      %13 = vector.load %arg5[%c0_12, %c0_13] : memref<1x128xf32, #tpu.memory_space<vmem>>, vector<1x128xf32>
      %14 = vector.broadcast %13 : vector<1x128xf32> to vector<64x128xf32>
      %15 = arith.addf %12, %14 : vector<64x128xf32>
      %c0_14 = arith.constant 0 : index
      %c0_15 = arith.constant 0 : index
      %16 = vector.load %arg6[%c0_14, %c0_15] : memref<64x128xf32, #tpu.memory_space<vmem>>, vector<64x128xf32>
      tpu.vector_store %arg6[%c0_14, %c0_15], %15 {strides = array<i32>} : memref<64x128xf32, #tpu.memory_space<vmem>>, vector<64x128xf32>,
    } else {
    }
    return
  }
  func.func @transform_0(%arg0: i32, %arg1: i32, %arg2: i32) -> (i32, i32) {
    %c0_i32 = arith.constant 0 : i32
    return %arg0, %arg2 : i32, i32
  }
  func.func @transform_1(%arg0: i32, %arg1: i32, %arg2: i32) -> (i32, i32) {
    %c0_i32 = arith.constant 0 : i32
    return %arg2, %arg1 : i32, i32
  }
  func.func @transform_2(%arg0: i32, %arg1: i32, %arg2: i32) -> (i32, i32) {
    %c0_i32 = arith.constant 0 : i32
    %c0_i32_0 = arith.constant 0 : i32
    return %c0_i32, %arg1 : i32, i32
  }
  func.func @transform_3(%arg0: i32, %arg1: i32, %arg2: i32) -> (i32, i32) {
    %c0_i32 = arith.constant 0 : i32
    return %arg0, %arg1 : i32, i32
  }
}

</mosaic_0001>

<llo_original>
// kernel: tpu_custom_call.1
$region0: #{tpu_custom_call.1}
  #allocation0 [shape = 'u32[]', space=smem, size = 0x4, offset = 0x4, fixed_abs, tag = 'smem constant byte address 0x4 - core index']
  #allocation1 [shape = 'u32[144,128]{1,0:T(1,128)}', space=vmem, size = 0x12000, scoped, tag = 'internal scratch']
  #allocation2 [shape = 'f32[64,128]{1,0:T(8,128)}', space=vmem, size = 0x8000, scoped, tag = 'scratch operand']
  %s0 = inlined_call_operand.vmem [shape: f32[64,32], index: 0, kind: input, shape index: {}]
  %s1 = inlined_call_operand.vmem [shape: f32[32,128], index: 1, kind: input, shape index: {}]
  %s2 = inlined_call_operand.vmem [shape: f32[1,128], index: 2, kind: input, shape index: {}]
  %s3 = inlined_call_operand.hbm [shape: f32[64,128], index: 3, kind: output, shape index: {}]
  %s4 = sld [smem:[#allocation0]]
  $region30: #{tpu_custom_call.1} parent=0
    _
  %s6 = ssub.s32 1, %s4
  %s7 = scalar_select 0, %s6, %s4
  $region1: #{tpu_custom_call.1} parent=0
    #allocation3 [shape = 'u8[32768]{0}', space=vmem, size = 0x8000, scoped, tag = 'output window, operand 0, single buffered']
    #allocation4 [shape = 's32[1]{0}', space=sflag, size = 0x4, scoped, tag = 'scoped memory for tpu_custom_call.1']
    %8 = vsyncpa [#allocation4], 0
    // Predicated region
    $region2: #{tpu_custom_call.1} parent=1 // pred_check
      _
    $region3: #{tpu_custom_call.1} parent=1 // pred_check_branch
      %10 = sbr.rel (0) target = $region5
    $region4: #{tpu_custom_call.1} parent=1 // pred_region
      _
    $region5: #{tpu_custom_call.1} parent=1 // pred_fallthru
      _
    // Predicated region
    $region6: #{tpu_custom_call.1} parent=1 // pred_check
      _
    $region7: #{tpu_custom_call.1} parent=1 // pred_check_branch
      %12 = sbr.rel (0) target = $region9
    $region8: #{tpu_custom_call.1} parent=1 // pred_region
      _
    $region9: #{tpu_custom_call.1} parent=1 // pred_fallthru
      _
    // Predicated region
    $region10: #{tpu_custom_call.1} parent=1 // pred_check
      _
    $region11: #{tpu_custom_call.1} parent=1 // pred_check_branch
      %14 = sbr.rel (0) target = $region13
    $region12: #{tpu_custom_call.1} parent=1 // pred_region
      _
    $region13: #{tpu_custom_call.1} parent=1 // pred_fallthru
      _
    %p15 = scmp.eq.s32.totalorder 0, 0
    // Predicated region
    $region14: #{tpu_custom_call.1} parent=1 // pred_check
      %p16 = pneg %p15
    $region15: #{tpu_custom_call.1} parent=1 // pred_check_branch
      %18 = sbr.rel (%p16) target = $region17
    $region16: #{tpu_custom_call.1} parent=1 // pred_region
      %19 = vst [vmem:[#allocation2] sm:$0xff] 0.0
      %20 = vst [vmem:[#allocation2 + $0x8] sm:$0xff] 0.0
      %21 = vst [vmem:[#allocation2 + $0x10] sm:$0xff] 0.0
      %22 = vst [vmem:[#allocation2 + $0x18] sm:$0xff] 0.0
      %23 = vst [vmem:[#allocation2 + $0x20] sm:$0xff] 0.0
      %24 = vst [vmem:[#allocation2 + $0x28] sm:$0xff] 0.0
      %25 = vst [vmem:[#allocation2 + $0x30] sm:$0xff] 0.0
      %26 = vst [vmem:[#allocation2 + $0x38] sm:$0xff] 0.0
    $region17: #{tpu_custom_call.1} parent=1 // pred_fallthru
      _
    %v27 = vld [vmem:[#allocation2] sm:$0xff]
    %v28 = vld [vmem:[#allocation2 + $0x8] sm:$0xff]
    %v29 = vld [vmem:[#allocation2 + $0x10] sm:$0xff]
    %v30 = vld [vmem:[#allocation2 + $0x18] sm:$0xff]
    %v31 = vld [vmem:[#allocation2 + $0x20] sm:$0xff]
    %v32 = vld [vmem:[#allocation2 + $0x28] sm:$0xff]
    %v33 = vld [vmem:[#allocation2 + $0x30] sm:$0xff]
    %v34 = vld [vmem:[#allocation2 + $0x38] sm:$0xff]
    %v35 = vld [vmem:[%s0] sm:$0xff]
    %v36 = vld [vmem:[%s0 + $0x8] sm:$0xff]
    %v37 = vld [vmem:[%s0 + $0x10] sm:$0xff]
    %v38 = vld [vmem:[%s0 + $0x18] sm:$0xff]
    %v39 = vld [vmem:[%s0 + $0x20] sm:$0xff]
    %v40 = vld [vmem:[%s0 + $0x28] sm:$0xff]
    %v41 = vld [vmem:[%s0 + $0x30] sm:$0xff]
    %v42 = vld [vmem:[%s0 + $0x38] sm:$0xff]
    %v43 = vld [vmem:[%s1] sm:$0xff]
    %v44 = vld [vmem:[%s1 + $0x8] sm:$0xff]
    %v45 = vld [vmem:[%s1 + $0x10] sm:$0xff]
    %v46 = vld [vmem:[%s1 + $0x18] sm:$0xff]
    %vm47 = vcmask 261120
    %v49 = vsel %vm47, %v35, 0
    %v52 = vsel %vm47, %v36, 0
    %v55 = vsel %vm47, %v37, 0
    %v58 = vsel %vm47, %v38, 0
    %v61 = vsel %vm47, %v39, 0
    %v64 = vsel %vm47, %v40, 0
    %v67 = vsel %vm47, %v41, 0
    %v70 = vsel %vm47, %v42, 0
    %72 = vmatprep.subr.mxu0 0.0
    %73 = vmatpush1.msra.mxu0 %v43
    %74 = vmatprep.subr.mxu0 0.0
    %75 = vmatpush1.msra.mxu0 %v44
    %76 = vmatprep.subr.mxu0 0.0
    %77 = vmatpush1.msra.mxu0 %v45
    %78 = vmatprep.subr.mxu0 0.0
    %79 = vmatpush1.msra.mxu0 %v46
    %80 = vmatprep.subr.mxu0 0.0
    %81 = vmatpush1.msra.mxu0 0.0
    %82 = vmatprep.subr.mxu0 0.0
    %83 = vmatpush1.msra.mxu0 0.0
    %84 = vmatprep.subr.mxu0 0.0
    %85 = vmatpush1.msra.mxu0 0.0
    %86 = vmatprep.subr.mxu0 0.0
    %87 = vmatpush1.msra.mxu0 0.0
    %88 = vmatprep.subr.mxu0 0.0
    %89 = vmatpush1.msra.mxu0 0.0
    %90 = vmatprep.subr.mxu0 0.0
    %91 = vmatpush1.msra.mxu0 0.0
    %92 = vmatprep.subr.mxu0 0.0
    %93 = vmatpush1.msra.mxu0 0.0
    %94 = vmatprep.subr.mxu0 0.0
    %95 = vmatpush1.msra.mxu0 0.0
    %96 = vmatprep.subr.mxu0 0.0
    %97 = vmatpush1.msra.mxu0 0.0
    %98 = vmatprep.subr.mxu0 0.0
    %99 = vmatpush1.msra.mxu0 0.0
    %100 = vmatprep.subr.mxu0 0.0
    %101 = vmatpush1.msra.mxu0 0.0
    %102 = vmatprep.subr.mxu0 0.0
    %103 = vmatpush1.msra.mxu0 0.0
    %104 = vmatprep.subr.mxu0 0.0
    %105 = vmatpush1.msra.mxu0 0.0
    %106 = vmatprep.subr.mxu0 0.0
    %107 = vmatpush1.msra.mxu0 0.0
    %108 = vmatprep.subr.mxu0 0.0
    %109 = vmatpush1.msra.mxu0 0.0
    %110 = vmatprep.subr.mxu0 0.0
    %111 = vmatpush1.msra.mxu0 0.0
    %112 = vmatprep.subr.mxu0 0.0
    %113 = vmatpush1.msra.mxu0 0.0
    %114 = vmatprep.subr.mxu0 0.0
    %115 = vmatpush1.msra.mxu0 0.0
    %116 = vmatprep.subr.mxu0 0.0
    %117 = vmatpush1.msra.mxu0 0.0
    %118 = vmatprep.subr.mxu0 0.0
    %119 = vmatpush1.msra.mxu0 0.0
    %120 = vmatprep.subr.mxu0 0.0
    %121 = vmatpush1.msra.mxu0 0.0
    %122 = vmatprep.subr.mxu0 0.0
    %123 = vmatpush1.msra.mxu0 0.0
    %124 = vmatprep.subr.mxu0 0.0
    %125 = vmatpush1.msra.mxu0 0.0
    %126 = vmatprep.subr.mxu0 0.0
    %127 = vmatpush1.msra.mxu0 0.0
    %128 = vmatprep.subr.mxu0 0.0
    %129 = vmatpush1.msra.mxu0 0.0
    %130 = vmatprep.subr.mxu0 0.0
    %131 = vmatpush1.msra.mxu0 0.0
    %132 = vmatprep.subr.mxu0 0.0
    %133 = vmatpush1.msra.mxu0 0.0
    %134 = vmatprep.subr.mxu0 0.0
    %135 = vmatpush1.msra.mxu0 0.0
    %136 = vmatprep.mubr.f32.mxu0 0.0
    %137 = vmatmul.mubr.f32.gmra.mrb[0].mxu0 %v49
    %v138 = vpop.f32.mrb[0].mxu0
    %v139 = vadd.f32 0.0, %v138
    %v140 = vpop.f32.mrb[0].mxu0
    %141 = vmatprep.mubr.f32.mxu0 0.0
    %142 = vmatmul.mubr.f32.gmra.mrb[0].mxu0 %v52
    %v143 = vpop.f32.mrb[0].mxu0
    %v144 = vadd.f32 0.0, %v143
    %v145 = vpop.f32.mrb[0].mxu0
    %146 = vmatprep.mubr.f32.mxu0 0.0
    %147 = vmatmul.mubr.f32.gmra.mrb[0].mxu0 %v55
    %v148 = vpop.f32.mrb[0].mxu0
    %v149 = vadd.f32 0.0, %v148
    %v150 = vpop.f32.mrb[0].mxu0
    %151 = vmatprep.mubr.f32.mxu0 0.0
    %152 = vmatmul.mubr.f32.gmra.mrb[0].mxu0 %v58
    %v153 = vpop.f32.mrb[0].mxu0
    %v154 = vadd.f32 0.0, %v153
    %v155 = vpop.f32.mrb[0].mxu0
    %156 = vmatprep.mubr.f32.mxu0 0.0
    %157 = vmatmul.mubr.f32.gmra.mrb[0].mxu0 %v61
    %v158 = vpop.f32.mrb[0].mxu0
    %v159 = vadd.f32 0.0, %v158
    %v160 = vpop.f32.mrb[0].mxu0
    %161 = vmatprep.mubr.f32.mxu0 0.0
    %162 = vmatmul.mubr.f32.gmra.mrb[0].mxu0 %v64
    %v163 = vpop.f32.mrb[0].mxu0
    %v164 = vadd.f32 0.0, %v163
    %v165 = vpop.f32.mrb[0].mxu0
    %166 = vmatprep.mubr.f32.mxu0 0.0
    %167 = vmatmul.mubr.f32.gmra.mrb[0].mxu0 %v67
    %v168 = vpop.f32.mrb[0].mxu0
    %v169 = vadd.f32 0.0, %v168
    %v170 = vpop.f32.mrb[0].mxu0
    %171 = vmatprep.mubr.f32.mxu0 0.0
    %172 = vmatmul.mubr.f32.gmra.mrb[0].mxu0 %v70
    %v173 = vpop.f32.mrb[0].mxu0
    %v174 = vadd.f32 0.0, %v173
    %v175 = vpop.f32.mrb[0].mxu0
    %176 = vdwg.mxu0
    %v177 = vadd.f32 %v27, %v139
    %v178 = vadd.f32 %v28, %v144
    %v179 = vadd.f32 %v29, %v149
    %v180 = vadd.f32 %v30, %v154
    %v181 = vadd.f32 %v31, %v159
    %v182 = vadd.f32 %v32, %v164
    %v183 = vadd.f32 %v33, %v169
    %v184 = vadd.f32 %v34, %v174
    %185 = vst [vmem:[#allocation2] sm:$0xff] %v177
    %186 = vst [vmem:[#allocation2 + $0x8] sm:$0xff] %v178
    %187 = vst [vmem:[#allocation2 + $0x10] sm:$0xff] %v179
    %188 = vst [vmem:[#allocation2 + $0x18] sm:$0xff] %v180
    %189 = vst [vmem:[#allocation2 + $0x20] sm:$0xff] %v181
    %190 = vst [vmem:[#allocation2 + $0x28] sm:$0xff] %v182
    %191 = vst [vmem:[#allocation2 + $0x30] sm:$0xff] %v183
    %192 = vst [vmem:[#allocation2 + $0x38] sm:$0xff] %v184
    // Predicated region
    $region18: #{tpu_custom_call.1} parent=1 // pred_check
      %p193 = pneg %p15
    $region19: #{tpu_custom_call.1} parent=1 // pred_check_branch
      %195 = sbr.rel (%p193) target = $region21
    $region20: #{tpu_custom_call.1} parent=1 // pred_region
      %v196 = vld [vmem:[#allocation2] sm:$0xff]
      %v197 = vld [vmem:[#allocation2 + $0x8] sm:$0xff]
      %v198 = vld [vmem:[#allocation2 + $0x10] sm:$0xff]
      %v199 = vld [vmem:[#allocation2 + $0x18] sm:$0xff]
      %v200 = vld [vmem:[#allocation2 + $0x20] sm:$0xff]
      %v201 = vld [vmem:[#allocation2 + $0x28] sm:$0xff]
      %v202 = vld [vmem:[#allocation2 + $0x30] sm:$0xff]
      %v203 = vld [vmem:[#allocation2 + $0x38] sm:$0xff]
      %v204 = vld [vmem:[%s2] sm:$0x1]
      %v206 = vlaneseq
      %v207 = vshrl.u32 %v206, 7
      %v208 = vsub.s32 0, %v207
      %v209 = vrot.slane %v204, %v208
      %v211 = vadd.f32 %v196, %v209
      %v212 = vadd.f32 %v197, %v209
      %v213 = vadd.f32 %v198, %v209
      %v214 = vadd.f32 %v199, %v209
      %v215 = vadd.f32 %v200, %v209
      %v216 = vadd.f32 %v201, %v209
      %v217 = vadd.f32 %v202, %v209
      %v218 = vadd.f32 %v203, %v209
      %219 = vst [vmem:[#allocation3] sm:$0xff] %v211
      %220 = vst [vmem:[#allocation3 + $0x8] sm:$0xff] %v212
      %221 = vst [vmem:[#allocation3 + $0x10] sm:$0xff] %v213
      %222 = vst [vmem:[#allocation3 + $0x18] sm:$0xff] %v214
      %223 = vst [vmem:[#allocation3 + $0x20] sm:$0xff] %v215
      %224 = vst [vmem:[#allocation3 + $0x28] sm:$0xff] %v216
      %225 = vst [vmem:[#allocation3 + $0x30] sm:$0xff] %v217
      %226 = vst [vmem:[#allocation3 + $0x38] sm:$0xff] %v218
    $region21: #{tpu_custom_call.1} parent=1 // pred_fallthru
      _
    // Predicated region
    $region22: #{tpu_custom_call.1} parent=1 // pred_check
      _
    $region23: #{tpu_custom_call.1} parent=1 // pred_check_branch
      %228 = sbr.rel (0) target = $region25
    $region24: #{tpu_custom_call.1} parent=1 // pred_region
      %s230 = ssub.s32 1024, 1024
      %231 = vsyncadd [#allocation4], %s230
      %s232 = sshll.u32 [#allocation3], 4
      %s233 = int_to_ptr.vmem [resolvable:$true] %s232
      %238 = dma.vmem_to_hbm [thread:$0]  %s233, 1024, %s3, [#allocation4], 128, 128, 8
    $region25: #{tpu_custom_call.1} parent=1 // pred_fallthru
      _
    // Predicated region
    $region26: #{tpu_custom_call.1} parent=1 // pred_check
      _
    $region27: #{tpu_custom_call.1} parent=1 // pred_check_branch
      %240 = sbr.rel (0) target = $region29
    $region28: #{tpu_custom_call.1} parent=1 // pred_region
      %241 = dma.done [#allocation4], 1024
    $region29: #{tpu_custom_call.1} parent=1 // pred_fallthru
      _
    %242 = vsyncpa [#allocation4], 1

</llo_original>
